<compile_context>
chip_gen: v6e
topology: v6e:2x2x1
jax: 0.10.0
libtpu: 0.0.40
codegen_flags: <defaults>
</compile_context>

<pallas_src>
import functools

import jax
import jax.numpy as jnp
from jax.experimental import pallas as pl
from jax.experimental.pallas import tpu as pltpu

_LANE = 128  # TPU lane width (last-dim tile)


def _round_up(v, m):
    return ((v + m - 1) // m) * m


def _mlp_kernel(x_ref, *refs, num_hidden_layers):
    """Fused MLP over one batch tile.

    refs = (w0, b0, w1, b1, ..., w_final, b_final, out_ref)
    The first `num_hidden_layers` linear layers are followed by ReLU; the
    final linear has no activation.
    """
    out_ref = refs[-1]
    params = refs[:-1]

    h = x_ref[...]
    for layer in range(num_hidden_layers + 1):
        w_ref = params[2 * layer]
        b_ref = params[2 * layer + 1]
        # Feed native dtype (f32 or bf16) to the MXU, accumulate in f32.
        acc = jnp.dot(h.astype(w_ref.dtype), w_ref[...],
                      preferred_element_type=jnp.float32)
        acc = acc + b_ref[...].astype(jnp.float32)
        if layer < num_hidden_layers:
            acc = jnp.maximum(acc, 0.0)  # ReLU on hidden layers only
        h = acc
    out_ref[...] = h.astype(out_ref.dtype)


def mlp_forward(x, weights, biases, *, tile_m=256):
    """Run the fused MLP Pallas kernel.

    x:        [N, in_dim]
    weights:  list of arrays, weights[i] is [fan_in_i, fan_out_i]
    biases:   list of arrays, biases[i] is [1, fan_out_i]
    The last (weights, biases) pair is the output layer (no activation).
    """
    N, in_dim = x.shape
    out_dim = weights[-1].shape[1]
    num_hidden_layers = len(weights) - 1

    # --- choose an MXU-aligned batch tile (multiple of 128 rows) ------------
    tile_m_eff = min(tile_m, max(_LANE, _round_up(N, _LANE)))
    tile_m_eff = _round_up(tile_m_eff, _LANE)
    n_pad = _round_up(N, tile_m_eff)

    # --- pad all feature dims to multiples of 128 lanes (lane-dense) --------
    in_pad = _round_up(in_dim, _LANE)
    out_pad = _round_up(out_dim, _LANE)

    x_p = jnp.pad(x, ((0, n_pad - N), (0, in_pad - in_dim)))

    params_flat = []
    in_specs = [pl.BlockSpec((tile_m_eff, in_pad), lambda i: (i, 0))]
    for w, b in zip(weights, biases):
        fi, fo = w.shape
        fi_p, fo_p = _round_up(fi, _LANE), _round_up(fo, _LANE)
        w_p = jnp.pad(w, ((0, fi_p - fi), (0, fo_p - fo)))
        b_p = jnp.pad(b, ((0, 0), (0, fo_p - fo)))
        # Whole weight/bias resident in VMEM, constant block index across the
        # grid (Pallas DMAs it once).  For very large h_dim (>~2K) switch to a
        # streamed K/N tiling or pl.Buffered(1) to respect v7x's 64 MiB VMEM.
        in_specs.append(pl.BlockSpec(w_p.shape, lambda i: (0, 0)))
        in_specs.append(pl.BlockSpec(b_p.shape, lambda i: (0, 0)))
        params_flat.extend([w_p, b_p])

    out_specs = pl.BlockSpec((tile_m_eff, out_pad), lambda i: (i, 0))
    grid = (n_pad // tile_m_eff,)

    # Scheduling hint for XLA.
    flops = 2 * n_pad * sum(int(p.shape[0]) * int(p.shape[1])
                            for p in params_flat[0::2])
    bytes_accessed = (
        x_p.size * x_p.dtype.itemsize
        + sum(p.size * p.dtype.itemsize for p in params_flat)
        + n_pad * out_pad * x.dtype.itemsize
    )
    cost = pl.CostEstimate(flops=flops, transcendentals=0,
                           bytes_accessed=bytes_accessed)

    kernel = functools.partial(_mlp_kernel, num_hidden_layers=num_hidden_layers)

    out_p = pl.pallas_call(
        kernel,
        out_shape=jax.ShapeDtypeStruct((n_pad, out_pad), x.dtype),
        grid_spec=pltpu.PrefetchScalarGridSpec(
            num_scalar_prefetch=0,
            grid=grid,
            in_specs=in_specs,
            out_specs=out_specs,
        ),
        compiler_params=pltpu.CompilerParams(
            dimension_semantics=("parallel",),
        ),
        cost_estimate=cost,
    )(x_p, *params_flat)

    # Strip batch and lane padding.
    return out_p[:N, :out_dim]


def init_mlp_params(key, in_dim, out_dim, num_layers):
    """Deterministic synthetic parameters matching MLP.__init__ shapes."""
    h_dim = in_dim if out_dim < 10 else out_dim
    weights, biases = [], []
    fan_in = in_dim
    for _ in range(num_layers):
        key, kw, kb = jax.random.split(key, 3)
        weights.append(jax.random.normal(kw, (fan_in, h_dim), jnp.float32) * 0.1)
        biases.append(jax.random.normal(kb, (1, h_dim), jnp.float32) * 0.1)
        fan_in = h_dim
    key, kw, kb = jax.random.split(key, 3)
    weights.append(jax.random.normal(kw, (h_dim, out_dim), jnp.float32) * 0.1)
    biases.append(jax.random.normal(kb, (1, out_dim), jnp.float32) * 0.1)
    return weights, biases


def mlp_reference(x, weights, biases):
    """Pure-JAX reference mirroring the PyTorch forward."""
    h = x
    for w, b in zip(weights[:-1], biases[:-1]):
        h = jnp.maximum(h @ w + b, 0.0)
    return h @ weights[-1] + biases[-1]


if __name__ == "__main__":
    # Small, forward-consistent shapes: node features -> hidden -> out.
    # out_dim >= 10  =>  h_dim = out_dim (matches the PyTorch module rule).
    N, in_dim, out_dim, num_layers = 16, 32, 32, 3

    key = jax.random.PRNGKey(0)
    key, kx = jax.random.split(key)
    x = jax.random.normal(kx, (N, in_dim), jnp.float32)

    weights, biases = init_mlp_params(key, in_dim, out_dim, num_layers)

    out = mlp_forward(x, weights, biases)  # tile_m auto-capped for tiny N
    out = jax.block_until_ready(out)

    ref = mlp_reference(x, weights, biases)
    assert out.shape == (N, out_dim)
    assert jnp.allclose(out, ref, atol=1e-4, rtol=1e-4), "mismatch vs reference"

    # TODO(synk): layer_norm / batch_norm branches of MLP.__init__ (disabled by
    # default) are not implemented in the fused kernel.
    print("KERNEL_OK")
</pallas_src>

<mosaic_0001>
module attributes {stable_mosaic.version = 11 : i64} {
  func.func @_mlp_kernel(%arg0: i32, %arg1: memref<128x128xf32, #tpu.memory_space<vmem>>, %arg2: memref<128x128xf32, #tpu.memory_space<vmem>>, %arg3: memref<1x128xf32, #tpu.memory_space<vmem>>, %arg4: memref<128x128xf32, #tpu.memory_space<vmem>>, %arg5: memref<1x128xf32, #tpu.memory_space<vmem>>, %arg6: memref<128x128xf32, #tpu.memory_space<vmem>>, %arg7: memref<1x128xf32, #tpu.memory_space<vmem>>, %arg8: memref<128x128xf32, #tpu.memory_space<vmem>>, %arg9: memref<1x128xf32, #tpu.memory_space<vmem>>, %arg10: memref<128x128xf32, #tpu.memory_space<vmem>>) attributes {dimension_semantics = [#tpu.dimension_semantics<parallel>], iteration_bounds = array<i64: 1>, scalar_prefetch = 0 : i64, scratch_operands = 0 : i64, tpu.core_type = #tpu.core_type<tc>, window_params = [{transform_indices = @transform_0, window_bounds = array<i64: 128, 128>}, {pipeline_mode = #tpu.pipeline_mode<synchronous>, transform_indices = @transform_1, window_bounds = array<i64: 128, 128>}, {pipeline_mode = #tpu.pipeline_mode<synchronous>, transform_indices = @transform_2, window_bounds = array<i64: 1, 128>}, {pipeline_mode = #tpu.pipeline_mode<synchronous>, transform_indices = @transform_3, window_bounds = array<i64: 128, 128>}, {pipeline_mode = #tpu.pipeline_mode<synchronous>, transform_indices = @transform_4, window_bounds = array<i64: 1, 128>}, {pipeline_mode = #tpu.pipeline_mode<synchronous>, transform_indices = @transform_5, window_bounds = array<i64: 128, 128>}, {pipeline_mode = #tpu.pipeline_mode<synchronous>, transform_indices = @transform_6, window_bounds = array<i64: 1, 128>}, {pipeline_mode = #tpu.pipeline_mode<synchronous>, transform_indices = @transform_7, window_bounds = array<i64: 128, 128>}, {pipeline_mode = #tpu.pipeline_mode<synchronous>, transform_indices = @transform_8, window_bounds = array<i64: 1, 128>}, {transform_indices = @transform_9, window_bounds = array<i64: 128, 128>}]} {
    %c0 = arith.constant 0 : index
    %c0_0 = arith.constant 0 : index
    %0 = vector.load %arg1[%c0, %c0_0] : memref<128x128xf32, #tpu.memory_space<vmem>>, vector<128x128xf32>
    %c0_1 = arith.constant 0 : index
    %c0_2 = arith.constant 0 : index
    %1 = vector.load %arg2[%c0_1, %c0_2] : memref<128x128xf32, #tpu.memory_space<vmem>>, vector<128x128xf32>
    %cst = arith.constant dense<0.000000e+00> : vector<128x128xf32>
    %2 = tpu.matmul %0, %1, %cst {dimension_numbers = #tpu.dot_dimension_numbers<[1], [0], [0], [1], [0, 0, 1, 1], [], []>} : vector<128x128xf32>, vector<128x128xf32>, vector<128x128xf32> -> vector<128x128xf32>
    %c0_3 = arith.constant 0 : index
    %c0_4 = arith.constant 0 : index
    %3 = vector.load %arg3[%c0_3, %c0_4] : memref<1x128xf32, #tpu.memory_space<vmem>>, vector<1x128xf32>
    %4 = vector.broadcast %3 : vector<1x128xf32> to vector<128x128xf32>
    %5 = arith.addf %2, %4 : vector<128x128xf32>
    %cst_5 = arith.constant 0.000000e+00 : f32
    %6 = vector.broadcast %cst_5 : f32 to vector<128x128xf32>
    %7 = arith.maximumf %5, %6 : vector<128x128xf32>
    %c0_6 = arith.constant 0 : index
    %c0_7 = arith.constant 0 : index
    %8 = vector.load %arg4[%c0_6, %c0_7] : memref<128x128xf32, #tpu.memory_space<vmem>>, vector<128x128xf32>
    %cst_8 = arith.constant dense<0.000000e+00> : vector<128x128xf32>
    %9 = tpu.matmul %7, %8, %cst_8 {dimension_numbers = #tpu.dot_dimension_numbers<[1], [0], [0], [1], [0, 0, 1, 1], [], []>} : vector<128x128xf32>, vector<128x128xf32>, vector<128x128xf32> -> vector<128x128xf32>
    %c0_9 = arith.constant 0 : index
    %c0_10 = arith.constant 0 : index
    %10 = vector.load %arg5[%c0_9, %c0_10] : memref<1x128xf32, #tpu.memory_space<vmem>>, vector<1x128xf32>
    %11 = vector.broadcast %10 : vector<1x128xf32> to vector<128x128xf32>
    %12 = arith.addf %9, %11 : vector<128x128xf32>
    %cst_11 = arith.constant 0.000000e+00 : f32
    %13 = vector.broadcast %cst_11 : f32 to vector<128x128xf32>
    %14 = arith.maximumf %12, %13 : vector<128x128xf32>
    %c0_12 = arith.constant 0 : index
    %c0_13 = arith.constant 0 : index
    %15 = vector.load %arg6[%c0_12, %c0_13] : memref<128x128xf32, #tpu.memory_space<vmem>>, vector<128x128xf32>
    %cst_14 = arith.constant dense<0.000000e+00> : vector<128x128xf32>
    %16 = tpu.matmul %14, %15, %cst_14 {dimension_numbers = #tpu.dot_dimension_numbers<[1], [0], [0], [1], [0, 0, 1, 1], [], []>} : vector<128x128xf32>, vector<128x128xf32>, vector<128x128xf32> -> vector<128x128xf32>
    %c0_15 = arith.constant 0 : index
    %c0_16 = arith.constant 0 : index
    %17 = vector.load %arg7[%c0_15, %c0_16] : memref<1x128xf32, #tpu.memory_space<vmem>>, vector<1x128xf32>
    %18 = vector.broadcast %17 : vector<1x128xf32> to vector<128x128xf32>
    %19 = arith.addf %16, %18 : vector<128x128xf32>
    %cst_17 = arith.constant 0.000000e+00 : f32
    %20 = vector.broadcast %cst_17 : f32 to vector<128x128xf32>
    %21 = arith.maximumf %19, %20 : vector<128x128xf32>
    %c0_18 = arith.constant 0 : index
    %c0_19 = arith.constant 0 : index
    %22 = vector.load %arg8[%c0_18, %c0_19] : memref<128x128xf32, #tpu.memory_space<vmem>>, vector<128x128xf32>
    %cst_20 = arith.constant dense<0.000000e+00> : vector<128x128xf32>
    %23 = tpu.matmul %21, %22, %cst_20 {dimension_numbers = #tpu.dot_dimension_numbers<[1], [0], [0], [1], [0, 0, 1, 1], [], []>} : vector<128x128xf32>, vector<128x128xf32>, vector<128x128xf32> -> vector<128x128xf32>
    %c0_21 = arith.constant 0 : index
    %c0_22 = arith.constant 0 : index
    %24 = vector.load %arg9[%c0_21, %c0_22] : memref<1x128xf32, #tpu.memory_space<vmem>>, vector<1x128xf32>
    %25 = vector.broadcast %24 : vector<1x128xf32> to vector<128x128xf32>
    %26 = arith.addf %23, %25 : vector<128x128xf32>
    %c0_23 = arith.constant 0 : index
    %c0_24 = arith.constant 0 : index
    %27 = vector.load %arg10[%c0_23, %c0_24] : memref<128x128xf32, #tpu.memory_space<vmem>>, vector<128x128xf32>
    tpu.vector_store %arg10[%c0_23, %c0_24], %26 {strides = array<i32>} : memref<128x128xf32, #tpu.memory_space<vmem>>, vector<128x128xf32>,
    return
  }
  func.func @transform_0(%arg0: i32) -> (i32, i32) {
    %c0_i32 = arith.constant 0 : i32
    %c0_i32_0 = arith.constant 0 : i32
    return %arg0, %c0_i32 : i32, i32
  }
  func.func @transform_1(%arg0: i32) -> (i32, i32) {
    %c0_i32 = arith.constant 0 : i32
    %c0_i32_0 = arith.constant 0 : i32
    %c0_i32_1 = arith.constant 0 : i32
    return %c0_i32, %c0_i32_0 : i32, i32
  }
  func.func @transform_2(%arg0: i32) -> (i32, i32) {
    %c0_i32 = arith.constant 0 : i32
    %c0_i32_0 = arith.constant 0 : i32
    %c0_i32_1 = arith.constant 0 : i32
    return %c0_i32, %c0_i32_0 : i32, i32
  }
  func.func @transform_3(%arg0: i32) -> (i32, i32) {
    %c0_i32 = arith.constant 0 : i32
    %c0_i32_0 = arith.constant 0 : i32
    %c0_i32_1 = arith.constant 0 : i32
    return %c0_i32, %c0_i32_0 : i32, i32
  }
  func.func @transform_4(%arg0: i32) -> (i32, i32) {
    %c0_i32 = arith.constant 0 : i32
    %c0_i32_0 = arith.constant 0 : i32
    %c0_i32_1 = arith.constant 0 : i32
    return %c0_i32, %c0_i32_0 : i32, i32
  }
  func.func @transform_5(%arg0: i32) -> (i32, i32) {
    %c0_i32 = arith.constant 0 : i32
    %c0_i32_0 = arith.constant 0 : i32
    %c0_i32_1 = arith.constant 0 : i32
    return %c0_i32, %c0_i32_0 : i32, i32
  }
  func.func @transform_6(%arg0: i32) -> (i32, i32) {
    %c0_i32 = arith.constant 0 : i32
    %c0_i32_0 = arith.constant 0 : i32
    %c0_i32_1 = arith.constant 0 : i32
    return %c0_i32, %c0_i32_0 : i32, i32
  }
  func.func @transform_7(%arg0: i32) -> (i32, i32) {
    %c0_i32 = arith.constant 0 : i32
    %c0_i32_0 = arith.constant 0 : i32
    %c0_i32_1 = arith.constant 0 : i32
    return %c0_i32, %c0_i32_0 : i32, i32
  }
  func.func @transform_8(%arg0: i32) -> (i32, i32) {
    %c0_i32 = arith.constant 0 : i32
    %c0_i32_0 = arith.constant 0 : i32
    %c0_i32_1 = arith.constant 0 : i32
    return %c0_i32, %c0_i32_0 : i32, i32
  }
  func.func @transform_9(%arg0: i32) -> (i32, i32) {
    %c0_i32 = arith.constant 0 : i32
    %c0_i32_0 = arith.constant 0 : i32
    return %arg0, %c0_i32 : i32, i32
  }
}

</mosaic_0001>

<llo_original>
// kernel: tpu_custom_call.1
$region0: #{tpu_custom_call.1}
  #allocation0 [shape = 'u32[]', space=smem, size = 0x4, offset = 0x4, fixed_abs, tag = 'smem constant byte address 0x4 - core index']
  #allocation1 [shape = 'u32[144,128]{1,0:T(1,128)}', space=vmem, size = 0x12000, scoped, tag = 'internal scratch']
  %s0 = inlined_call_operand.hbm [shape: f32[128,128], index: 0, kind: input, shape index: {}]
  %s1 = inlined_call_operand.hbm [shape: f32[128,128], index: 1, kind: input, shape index: {}]
  %s2 = inlined_call_operand.vmem [shape: f32[1,128], index: 2, kind: input, shape index: {}]
  %s3 = inlined_call_operand.hbm [shape: f32[128,128], index: 3, kind: input, shape index: {}]
  %s4 = inlined_call_operand.vmem [shape: f32[1,128], index: 4, kind: input, shape index: {}]
  %s5 = inlined_call_operand.hbm [shape: f32[128,128], index: 5, kind: input, shape index: {}]
  %s6 = inlined_call_operand.vmem [shape: f32[1,128], index: 6, kind: input, shape index: {}]
  %s7 = inlined_call_operand.hbm [shape: f32[128,128], index: 7, kind: input, shape index: {}]
  %s8 = inlined_call_operand.vmem [shape: f32[1,128], index: 8, kind: input, shape index: {}]
  %s9 = inlined_call_operand.hbm [shape: f32[128,128], index: 9, kind: output, shape index: {}]
  %s10 = sld [smem:[#allocation0]]
  $region66: #{tpu_custom_call.1} parent=0
    _
  %s12 = ssub.s32 1, %s10
  %s13 = scalar_select 0, %s12, %s10
  $region1: #{tpu_custom_call.1} parent=0
    #allocation2 [shape = 'u8[65536]{0}', space=vmem, size = 0x10000, scoped, tag = 'input window, operand 0, single buffered']
    #allocation3 [shape = 's32[1]{0}', space=sflag, size = 0x4, scoped, tag = 'scoped memory for tpu_custom_call.1']
    #allocation4 [shape = 's32[1]{0}', space=sflag, size = 0x4, scoped, tag = 'scoped memory for tpu_custom_call.1']
    #allocation5 [shape = 'u8[65536]{0}', space=vmem, size = 0x10000, scoped, tag = 'input window, operand 1, single buffered']
    #allocation6 [shape = 's32[1]{0}', space=sflag, size = 0x4, scoped, tag = 'scoped memory for tpu_custom_call.1']
    #allocation7 [shape = 'u8[65536]{0}', space=vmem, size = 0x10000, scoped, tag = 'input window, operand 3, single buffered']
    #allocation8 [shape = 'u8[65536]{0}', space=vmem, size = 0x10000, scoped, tag = 'input window, operand 5, single buffered']
    #allocation9 [shape = 's32[1]{0}', space=sflag, size = 0x4, scoped, tag = 'scoped memory for tpu_custom_call.1']
    #allocation10 [shape = 'u8[65536]{0}', space=vmem, size = 0x10000, scoped, tag = 'input window, operand 7, single buffered']
    #allocation11 [shape = 'u8[65536]{0}', space=vmem, size = 0x10000, scoped, tag = 'output window, operand 0, single buffered']
    %14 = vsyncpa [#allocation3], 0
    %15 = vsyncpa [#allocation6], 0
    %16 = vsyncpa [#allocation9], 0
    %17 = vsyncpa [#allocation4], 0
    // Predicated region
    $region2: #{tpu_custom_call.1} parent=1 // pred_check
      _
    $region3: #{tpu_custom_call.1} parent=1 // pred_check_branch
      %19 = sbr.rel (0) target = $region5
    $region4: #{tpu_custom_call.1} parent=1 // pred_region
      %s21 = ssub.s32 2048, 2048
      %22 = vsyncadd [#allocation3], %s21
      %s23 = sshll.u32 [#allocation2], 4
      %s24 = int_to_ptr.vmem [resolvable:$true] %s23
      %29 = dma.hbm_to_vmem [thread:$0]  %s0, 2048, %s24, [#allocation3], 128, 128, 8
    $region5: #{tpu_custom_call.1} parent=1 // pred_fallthru
      _
    // Predicated region
    $region6: #{tpu_custom_call.1} parent=1 // pred_check
      _
    $region7: #{tpu_custom_call.1} parent=1 // pred_check_branch
      %31 = sbr.rel (0) target = $region9
    $region8: #{tpu_custom_call.1} parent=1 // pred_region
      %s33 = ssub.s32 2048, 2048
      %34 = vsyncadd [#allocation6], %s33
      %s35 = sshll.u32 [#allocation5], 4
      %s36 = int_to_ptr.vmem [resolvable:$true] %s35
      %41 = dma.hbm_to_vmem [thread:$0]  %s1, 2048, %s36, [#allocation6], 128, 128, 8
    $region9: #{tpu_custom_call.1} parent=1 // pred_fallthru
      _
    // Predicated region
    $region10: #{tpu_custom_call.1} parent=1 // pred_check
      _
    $region11: #{tpu_custom_call.1} parent=1 // pred_check_branch
      %43 = sbr.rel (0) target = $region13
    $region12: #{tpu_custom_call.1} parent=1 // pred_region
      _
    $region13: #{tpu_custom_call.1} parent=1 // pred_fallthru
      _
    // Predicated region
    $region14: #{tpu_custom_call.1} parent=1 // pred_check
      _
    $region15: #{tpu_custom_call.1} parent=1 // pred_check_branch
      %45 = sbr.rel (0) target = $region17
    $region16: #{tpu_custom_call.1} parent=1 // pred_region
      %s47 = ssub.s32 2048, 2048
      %48 = vsyncadd [#allocation6], %s47
      %s49 = sshll.u32 [#allocation7], 4
      %s50 = int_to_ptr.vmem [resolvable:$true] %s49
      %55 = dma.hbm_to_vmem [thread:$0]  %s3, 2048, %s50, [#allocation6], 128, 128, 8
    $region17: #{tpu_custom_call.1} parent=1 // pred_fallthru
      _
    // Predicated region
    $region18: #{tpu_custom_call.1} parent=1 // pred_check
      _
    $region19: #{tpu_custom_call.1} parent=1 // pred_check_branch
      %57 = sbr.rel (0) target = $region21
    $region20: #{tpu_custom_call.1} parent=1 // pred_region
      _
    $region21: #{tpu_custom_call.1} parent=1 // pred_fallthru
      _
    // Predicated region
    $region22: #{tpu_custom_call.1} parent=1 // pred_check
      _
    $region23: #{tpu_custom_call.1} parent=1 // pred_check_branch
      %59 = sbr.rel (0) target = $region25
    $region24: #{tpu_custom_call.1} parent=1 // pred_region
      %s61 = ssub.s32 2048, 2048
      %62 = vsyncadd [#allocation9], %s61
      %s63 = sshll.u32 [#allocation8], 4
      %s64 = int_to_ptr.vmem [resolvable:$true] %s63
      %69 = dma.hbm_to_vmem [thread:$0]  %s5, 2048, %s64, [#allocation9], 128, 128, 8
    $region25: #{tpu_custom_call.1} parent=1 // pred_fallthru
      _
    // Predicated region
    $region26: #{tpu_custom_call.1} parent=1 // pred_check
      _
    $region27: #{tpu_custom_call.1} parent=1 // pred_check_branch
      %71 = sbr.rel (0) target = $region29
    $region28: #{tpu_custom_call.1} parent=1 // pred_region
      _
    $region29: #{tpu_custom_call.1} parent=1 // pred_fallthru
      _
    // Predicated region
    $region30: #{tpu_custom_call.1} parent=1 // pred_check
      _
    $region31: #{tpu_custom_call.1} parent=1 // pred_check_branch
      %73 = sbr.rel (0) target = $region33
    $region32: #{tpu_custom_call.1} parent=1 // pred_region
      %s75 = ssub.s32 2048, 2048
      %76 = vsyncadd [#allocation9], %s75
      %s77 = sshll.u32 [#allocation10], 4
      %s78 = int_to_ptr.vmem [resolvable:$true] %s77
      %83 = dma.hbm_to_vmem [thread:$0]  %s7, 2048, %s78, [#allocation9], 128, 128, 8
    $region33: #{tpu_custom_call.1} parent=1 // pred_fallthru
      _
    // Predicated region
    $region34: #{tpu_custom_call.1} parent=1 // pred_check
      _
    $region35: #{tpu_custom_call.1} parent=1 // pred_check_branch
      %85 = sbr.rel (0) target = $region37
    $region36: #{tpu_custom_call.1} parent=1 // pred_region
      _
    $region37: #{tpu_custom_call.1} parent=1 // pred_fallthru
      _
    // Predicated region
    $region38: #{tpu_custom_call.1} parent=1 // pred_check
      _
    $region39: #{tpu_custom_call.1} parent=1 // pred_check_branch
      %87 = sbr.rel (0) target = $region41
    $region40: #{tpu_custom_call.1} parent=1 // pred_region
      %88 = dma.done [#allocation3], 2048
    $region41: #{tpu_custom_call.1} parent=1 // pred_fallthru
      _
    // Predicated region
    $region42: #{tpu_custom_call.1} parent=1 // pred_check
      _
    $region43: #{tpu_custom_call.1} parent=1 // pred_check_branch
      %90 = sbr.rel (0) target = $region45
    $region44: #{tpu_custom_call.1} parent=1 // pred_region
      %91 = dma.done [#allocation6], 2048
    $region45: #{tpu_custom_call.1} parent=1 // pred_fallthru
      _
    // Predicated region
    $region46: #{tpu_custom_call.1} parent=1 // pred_check
      _
    $region47: #{tpu_custom_call.1} parent=1 // pred_check_branch
      %93 = sbr.rel (0) target = $region49
    $region48: #{tpu_custom_call.1} parent=1 // pred_region
      %94 = dma.done [#allocation6], 2048
    $region49: #{tpu_custom_call.1} parent=1 // pred_fallthru
      _
    // Predicated region
    $region50: #{tpu_custom_call.1} parent=1 // pred_check
      _
    $region51: #{tpu_custom_call.1} parent=1 // pred_check_branch
      %96 = sbr.rel (0) target = $region53
    $region52: #{tpu_custom_call.1} parent=1 // pred_region
      %97 = dma.done [#allocation9], 2048
    $region53: #{tpu_custom_call.1} parent=1 // pred_fallthru
      _
    // Predicated region
    $region54: #{tpu_custom_call.1} parent=1 // pred_check
      _
    $region55: #{tpu_custom_call.1} parent=1 // pred_check_branch
      %99 = sbr.rel (0) target = $region57
    $region56: #{tpu_custom_call.1} parent=1 // pred_region
      %100 = dma.done [#allocation9], 2048
    $region57: #{tpu_custom_call.1} parent=1 // pred_fallthru
      _
    %v101 = vld [vmem:[#allocation2] sm:$0xff]
    %v102 = vld [vmem:[#allocation2 + $0x8] sm:$0xff]
    %v103 = vld [vmem:[#allocation2 + $0x10] sm:$0xff]
    %v104 = vld [vmem:[#allocation2 + $0x18] sm:$0xff]
    %v105 = vld [vmem:[#allocation2 + $0x20] sm:$0xff]
    %v106 = vld [vmem:[#allocation2 + $0x28] sm:$0xff]
    %v107 = vld [vmem:[#allocation2 + $0x30] sm:$0xff]
    %v108 = vld [vmem:[#allocation2 + $0x38] sm:$0xff]
    %v109 = vld [vmem:[#allocation2 + $0x40] sm:$0xff]
    %v110 = vld [vmem:[#allocation2 + $0x48] sm:$0xff]
    %v111 = vld [vmem:[#allocation2 + $0x50] sm:$0xff]
    %v112 = vld [vmem:[#allocation2 + $0x58] sm:$0xff]
    %v113 = vld [vmem:[#allocation2 + $0x60] sm:$0xff]
    %v114 = vld [vmem:[#allocation2 + $0x68] sm:$0xff]
    %v115 = vld [vmem:[#allocation2 + $0x70] sm:$0xff]
    %v116 = vld [vmem:[#allocation2 + $0x78] sm:$0xff]
    %v117 = vld [vmem:[#allocation5] sm:$0xff]
    %v118 = vld [vmem:[#allocation5 + $0x8] sm:$0xff]
    %v119 = vld [vmem:[#allocation5 + $0x10] sm:$0xff]
    %v120 = vld [vmem:[#allocation5 + $0x18] sm:$0xff]
    %v121 = vld [vmem:[#allocation5 + $0x20] sm:$0xff]
    %v122 = vld [vmem:[#allocation5 + $0x28] sm:$0xff]
    %v123 = vld [vmem:[#allocation5 + $0x30] sm:$0xff]
    %v124 = vld [vmem:[#allocation5 + $0x38] sm:$0xff]
    %v125 = vld [vmem:[#allocation5 + $0x40] sm:$0xff]
    %v126 = vld [vmem:[#allocation5 + $0x48] sm:$0xff]
    %v127 = vld [vmem:[#allocation5 + $0x50] sm:$0xff]
    %v128 = vld [vmem:[#allocation5 + $0x58] sm:$0xff]
    %v129 = vld [vmem:[#allocation5 + $0x60] sm:$0xff]
    %v130 = vld [vmem:[#allocation5 + $0x68] sm:$0xff]
    %v131 = vld [vmem:[#allocation5 + $0x70] sm:$0xff]
    %v132 = vld [vmem:[#allocation5 + $0x78] sm:$0xff]
    %v133 = vld [vmem:[%s2] sm:$0x1]
    %v135 = vlaneseq
    %v136 = vshrl.u32 %v135, 7
    %v137 = vsub.s32 0, %v136
    %v138 = vrot.slane %v133, %v137
    %140 = vmatprep.subr.mxu0 0.0
    %141 = vmatpush1.msra.mxu0 %v132
    %142 = vmatprep.subr.mxu0 0.0
    %143 = vmatpush1.msra.mxu0 %v131
    %144 = vmatprep.subr.mxu0 0.0
    %145 = vmatpush1.msra.mxu0 %v130
    %146 = vmatprep.subr.mxu0 0.0
    %147 = vmatpush1.msra.mxu0 %v129
    %148 = vmatprep.subr.mxu0 0.0
    %149 = vmatpush1.msra.mxu0 %v128
    %150 = vmatprep.subr.mxu0 0.0
    %151 = vmatpush1.msra.mxu0 %v127
    %152 = vmatprep.subr.mxu0 0.0
    %153 = vmatpush1.msra.mxu0 %v126
    %154 = vmatprep.subr.mxu0 0.0
    %155 = vmatpush1.msra.mxu0 %v125
    %156 = vmatprep.subr.mxu0 0.0
    %157 = vmatpush1.msra.mxu0 %v124
    %158 = vmatprep.subr.mxu0 0.0
    %159 = vmatpush1.msra.mxu0 %v123
    %160 = vmatprep.subr.mxu0 0.0
    %161 = vmatpush1.msra.mxu0 %v122
    %162 = vmatprep.subr.mxu0 0.0
    %163 = vmatpush1.msra.mxu0 %v121
    %164 = vmatprep.subr.mxu0 0.0
    %165 = vmatpush1.msra.mxu0 %v120
    %166 = vmatprep.subr.mxu0 0.0
    %167 = vmatpush1.msra.mxu0 %v119
    %168 = vmatprep.subr.mxu0 0.0
    %169 = vmatpush1.msra.mxu0 %v118
    %170 = vmatprep.subr.mxu0 0.0
    %171 = vmatpush1.msra.mxu0 %v117
    %172 = vmatprep.subr.mxu0 0.0
    %173 = vmatpush2.msra.mxu0 0.0
    %174 = vmatprep.subr.mxu0 0.0
    %175 = vmatpush2.msra.mxu0 0.0
    %176 = vmatprep.subr.mxu0 0.0
    %177 = vmatpush2.msra.mxu0 0.0
    %178 = vmatprep.subr.mxu0 0.0
    %179 = vmatpush2.msra.mxu0 0.0
    %180 = vmatprep.subr.mxu0 0.0
    %181 = vmatpush2.msra.mxu0 0.0
    %182 = vmatprep.subr.mxu0 0.0
    %183 = vmatpush2.msra.mxu0 0.0
    %184 = vmatprep.subr.mxu0 0.0
    %185 = vmatpush2.msra.mxu0 0.0
    %186 = vmatprep.subr.mxu0 0.0
    %187 = vmatpush2.msra.mxu0 0.0
    %188 = vmatprep.subr.mxu0 0.0
    %189 = vmatpush2.msra.mxu0 0.0
    %190 = vmatprep.subr.mxu0 0.0
    %191 = vmatpush2.msra.mxu0 0.0
    %192 = vmatprep.subr.mxu0 0.0
    %193 = vmatpush2.msra.mxu0 0.0
    %194 = vmatprep.subr.mxu0 0.0
    %195 = vmatpush2.msra.mxu0 0.0
    %196 = vmatprep.subr.mxu0 0.0
    %197 = vmatpush2.msra.mxu0 0.0
    %198 = vmatprep.subr.mxu0 0.0
    %199 = vmatpush2.msra.mxu0 0.0
    %200 = vmatprep.subr.mxu0 0.0
    %201 = vmatpush2.msra.mxu0 0.0
    %202 = vmatprep.subr.mxu0 0.0
    %203 = vmatpush2.msra.mxu0 0.0
    %204 = vmatprep.mubr.f32.mxu0 0.0
    %205 = vmatmul.mubr.f32.gmra.mxu0 %v101
    %v206 = vpop.f32.mrf.mxu0
    %v207 = vadd.f32 %v138, %v206
    %v208 = vpop.f32.mrf.mxu0
    %209 = vmatprep.mubr.f32.mxu0 0.0
    %210 = vmatmul.mubr.f32.gmra.mxu0 %v102
    %v211 = vpop.f32.mrf.mxu0
    %v212 = vadd.f32 %v138, %v211
    %v213 = vpop.f32.mrf.mxu0
    %214 = vmatprep.mubr.f32.mxu0 0.0
    %215 = vmatmul.mubr.f32.gmra.mxu0 %v103
    %v216 = vpop.f32.mrf.mxu0
    %v217 = vadd.f32 %v138, %v216
    %v218 = vpop.f32.mrf.mxu0
    %219 = vmatprep.mubr.f32.mxu0 0.0
    %220 = vmatmul.mubr.f32.gmra.mxu0 %v104
    %v221 = vpop.f32.mrf.mxu0
    %v222 = vadd.f32 %v138, %v221
    %v223 = vpop.f32.mrf.mxu0
    %224 = vmatprep.mubr.f32.mxu0 0.0
    %225 = vmatmul.mubr.f32.gmra.mxu0 %v105
    %v226 = vpop.f32.mrf.mxu0
    %v227 = vadd.f32 %v138, %v226
    %v228 = vpop.f32.mrf.mxu0
    %229 = vmatprep.mubr.f32.mxu0 0.0
    %230 = vmatmul.mubr.f32.gmra.mxu0 %v106
    %v231 = vpop.f32.mrf.mxu0
    %v232 = vadd.f32 %v138, %v231
    %v233 = vpop.f32.mrf.mxu0
    %234 = vmatprep.mubr.f32.mxu0 0.0
    %235 = vmatmul.mubr.f32.gmra.mxu0 %v107
    %v236 = vpop.f32.mrf.mxu0
    %v237 = vadd.f32 %v138, %v236
    %v238 = vpop.f32.mrf.mxu0
    %239 = vmatprep.mubr.f32.mxu0 0.0
    %240 = vmatmul.mubr.f32.gmra.mxu0 %v108
    %v241 = vpop.f32.mrf.mxu0
    %v242 = vadd.f32 %v138, %v241
    %v243 = vpop.f32.mrf.mxu0
    %244 = vmatprep.mubr.f32.mxu0 0.0
    %245 = vmatmul.mubr.f32.gmra.mxu0 %v109
    %v246 = vpop.f32.mrf.mxu0
    %v247 = vadd.f32 %v138, %v246
    %v248 = vpop.f32.mrf.mxu0
    %249 = vmatprep.mubr.f32.mxu0 0.0
    %250 = vmatmul.mubr.f32.gmra.mxu0 %v110
    %v251 = vpop.f32.mrf.mxu0
    %v252 = vadd.f32 %v138, %v251
    %v253 = vpop.f32.mrf.mxu0
    %254 = vmatprep.mubr.f32.mxu0 0.0
    %255 = vmatmul.mubr.f32.gmra.mxu0 %v111
    %v256 = vpop.f32.mrf.mxu0
    %v257 = vadd.f32 %v138, %v256
    %v258 = vpop.f32.mrf.mxu0
    %259 = vmatprep.mubr.f32.mxu0 0.0
    %260 = vmatmul.mubr.f32.gmra.mxu0 %v112
    %v261 = vpop.f32.mrf.mxu0
    %v262 = vadd.f32 %v138, %v261
    %v263 = vpop.f32.mrf.mxu0
    %264 = vmatprep.mubr.f32.mxu0 0.0
    %265 = vmatmul.mubr.f32.gmra.mxu0 %v113
    %v266 = vpop.f32.mrf.mxu0
    %v267 = vadd.f32 %v138, %v266
    %v268 = vpop.f32.mrf.mxu0
    %269 = vmatprep.mubr.f32.mxu0 0.0
    %270 = vmatmul.mubr.f32.gmra.mxu0 %v114
    %v271 = vpop.f32.mrf.mxu0
    %v272 = vadd.f32 %v138, %v271
    %v273 = vpop.f32.mrf.mxu0
    %274 = vmatprep.mubr.f32.mxu0 0.0
    %275 = vmatmul.mubr.f32.gmra.mxu0 %v115
    %v276 = vpop.f32.mrf.mxu0
    %v277 = vadd.f32 %v138, %v276
    %v278 = vpop.f32.mrf.mxu0
    %279 = vmatprep.mubr.f32.mxu0 0.0
    %280 = vmatmul.mubr.f32.gmra.mxu0 %v116
    %v281 = vpop.f32.mrf.mxu0
    %v282 = vadd.f32 %v138, %v281
    %v283 = vpop.f32.mrf.mxu0
    %284 = vdwg.mxu0
    %v285 = vmax.f32 %v207, 0.0
    %v286 = vmax.f32 %v212, 0.0
    %v287 = vmax.f32 %v217, 0.0
    %v288 = vmax.f32 %v222, 0.0
    %v289 = vmax.f32 %v227, 0.0
    %v290 = vmax.f32 %v232, 0.0
    %v291 = vmax.f32 %v237, 0.0
    %v292 = vmax.f32 %v242, 0.0
    %v293 = vmax.f32 %v247, 0.0
    %v294 = vmax.f32 %v252, 0.0
    %v295 = vmax.f32 %v257, 0.0
    %v296 = vmax.f32 %v262, 0.0
    %v297 = vmax.f32 %v267, 0.0
    %v298 = vmax.f32 %v272, 0.0
    %v299 = vmax.f32 %v277, 0.0
    %v300 = vmax.f32 %v282, 0.0
    %v301 = vld [vmem:[#allocation7] sm:$0xff]
    %v302 = vld [vmem:[#allocation7 + $0x8] sm:$0xff]
    %v303 = vld [vmem:[#allocation7 + $0x10] sm:$0xff]
    %v304 = vld [vmem:[#allocation7 + $0x18] sm:$0xff]
    %v305 = vld [vmem:[#allocation7 + $0x20] sm:$0xff]
    %v306 = vld [vmem:[#allocation7 + $0x28] sm:$0xff]
    %v307 = vld [vmem:[#allocation7 + $0x30] sm:$0xff]
    %v308 = vld [vmem:[#allocation7 + $0x38] sm:$0xff]
    %v309 = vld [vmem:[#allocation7 + $0x40] sm:$0xff]
    %v310 = vld [vmem:[#allocation7 + $0x48] sm:$0xff]
    %v311 = vld [vmem:[#allocation7 + $0x50] sm:$0xff]
    %v312 = vld [vmem:[#allocation7 + $0x58] sm:$0xff]
    %v313 = vld [vmem:[#allocation7 + $0x60] sm:$0xff]
    %v314 = vld [vmem:[#allocation7 + $0x68] sm:$0xff]
    %v315 = vld [vmem:[#allocation7 + $0x70] sm:$0xff]
    %v316 = vld [vmem:[#allocation7 + $0x78] sm:$0xff]
    %v317 = vld [vmem:[%s4] sm:$0x1]
    %v319 = vlaneseq
    %v320 = vshrl.u32 %v319, 7
    %v321 = vsub.s32 0, %v320
    %v322 = vrot.slane %v317, %v321
    %324 = vmatprep.subr.mxu0 0.0
    %325 = vmatpush1.msra.mxu0 %v316
    %326 = vmatprep.subr.mxu0 0.0
    %327 = vmatpush1.msra.mxu0 %v315
    %328 = vmatprep.subr.mxu0 0.0
    %329 = vmatpush1.msra.mxu0 %v314
    %330 = vmatprep.subr.mxu0 0.0
    %331 = vmatpush1.msra.mxu0 %v313
    %332 = vmatprep.subr.mxu0 0.0
    %333 = vmatpush1.msra.mxu0 %v312
    %334 = vmatprep.subr.mxu0 0.0
    %335 = vmatpush1.msra.mxu0 %v311
    %336 = vmatprep.subr.mxu0 0.0
    %337 = vmatpush1.msra.mxu0 %v310
    %338 = vmatprep.subr.mxu0 0.0
    %339 = vmatpush1.msra.mxu0 %v309
    %340 = vmatprep.subr.mxu0 0.0
    %341 = vmatpush1.msra.mxu0 %v308
    %342 = vmatprep.subr.mxu0 0.0
    %343 = vmatpush1.msra.mxu0 %v307
    %344 = vmatprep.subr.mxu0 0.0
    %345 = vmatpush1.msra.mxu0 %v306
    %346 = vmatprep.subr.mxu0 0.0
    %347 = vmatpush1.msra.mxu0 %v305
    %348 = vmatprep.subr.mxu0 0.0
    %349 = vmatpush1.msra.mxu0 %v304
    %350 = vmatprep.subr.mxu0 0.0
    %351 = vmatpush1.msra.mxu0 %v303
    %352 = vmatprep.subr.mxu0 0.0
    %353 = vmatpush1.msra.mxu0 %v302
    %354 = vmatprep.subr.mxu0 0.0
    %355 = vmatpush1.msra.mxu0 %v301
    %356 = vmatprep.subr.mxu0 0.0
    %357 = vmatpush2.msra.mxu0 0.0
    %358 = vmatprep.subr.mxu0 0.0
    %359 = vmatpush2.msra.mxu0 0.0
    %360 = vmatprep.subr.mxu0 0.0
    %361 = vmatpush2.msra.mxu0 0.0
    %362 = vmatprep.subr.mxu0 0.0
    %363 = vmatpush2.msra.mxu0 0.0
    %364 = vmatprep.subr.mxu0 0.0
    %365 = vmatpush2.msra.mxu0 0.0
    %366 = vmatprep.subr.mxu0 0.0
    %367 = vmatpush2.msra.mxu0 0.0
    %368 = vmatprep.subr.mxu0 0.0
    %369 = vmatpush2.msra.mxu0 0.0
    %370 = vmatprep.subr.mxu0 0.0
    %371 = vmatpush2.msra.mxu0 0.0
    %372 = vmatprep.subr.mxu0 0.0
    %373 = vmatpush2.msra.mxu0 0.0
    %374 = vmatprep.subr.mxu0 0.0
    %375 = vmatpush2.msra.mxu0 0.0
    %376 = vmatprep.subr.mxu0 0.0
    %377 = vmatpush2.msra.mxu0 0.0
    %378 = vmatprep.subr.mxu0 0.0
    %379 = vmatpush2.msra.mxu0 0.0
    %380 = vmatprep.subr.mxu0 0.0
    %381 = vmatpush2.msra.mxu0 0.0
    %382 = vmatprep.subr.mxu0 0.0
    %383 = vmatpush2.msra.mxu0 0.0
    %384 = vmatprep.subr.mxu0 0.0
    %385 = vmatpush2.msra.mxu0 0.0
    %386 = vmatprep.subr.mxu0 0.0
    %387 = vmatpush2.msra.mxu0 0.0
    %388 = vmatprep.mubr.f32.mxu0 0.0
    %389 = vmatmul.mubr.f32.gmra.mxu0 %v285
    %v390 = vpop.f32.mrf.mxu0
    %v391 = vadd.f32 %v322, %v390
    %v392 = vpop.f32.mrf.mxu0
    %393 = vmatprep.mubr.f32.mxu0 0.0
    %394 = vmatmul.mubr.f32.gmra.mxu0 %v286
    %v395 = vpop.f32.mrf.mxu0
    %v396 = vadd.f32 %v322, %v395
    %v397 = vpop.f32.mrf.mxu0
    %398 = vmatprep.mubr.f32.mxu0 0.0
    %399 = vmatmul.mubr.f32.gmra.mxu0 %v287
    %v400 = vpop.f32.mrf.mxu0
    %v401 = vadd.f32 %v322, %v400
    %v402 = vpop.f32.mrf.mxu0
    %403 = vmatprep.mubr.f32.mxu0 0.0
    %404 = vmatmul.mubr.f32.gmra.mxu0 %v288
    %v405 = vpop.f32.mrf.mxu0
    %v406 = vadd.f32 %v322, %v405
    %v407 = vpop.f32.mrf.mxu0
    %408 = vmatprep.mubr.f32.mxu0 0.0
    %409 = vmatmul.mubr.f32.gmra.mxu0 %v289
    %v410 = vpop.f32.mrf.mxu0
    %v411 = vadd.f32 %v322, %v410
    %v412 = vpop.f32.mrf.mxu0
    %413 = vmatprep.mubr.f32.mxu0 0.0
    %414 = vmatmul.mubr.f32.gmra.mxu0 %v290
    %v415 = vpop.f32.mrf.mxu0
    %v416 = vadd.f32 %v322, %v415
    %v417 = vpop.f32.mrf.mxu0
    %418 = vmatprep.mubr.f32.mxu0 0.0
    %419 = vmatmul.mubr.f32.gmra.mxu0 %v291
    %v420 = vpop.f32.mrf.mxu0
    %v421 = vadd.f32 %v322, %v420
    %v422 = vpop.f32.mrf.mxu0
    %423 = vmatprep.mubr.f32.mxu0 0.0
    %424 = vmatmul.mubr.f32.gmra.mxu0 %v292
    %v425 = vpop.f32.mrf.mxu0
    %v426 = vadd.f32 %v322, %v425
    %v427 = vpop.f32.mrf.mxu0
    %428 = vmatprep.mubr.f32.mxu0 0.0
    %429 = vmatmul.mubr.f32.gmra.mxu0 %v293
    %v430 = vpop.f32.mrf.mxu0
    %v431 = vadd.f32 %v322, %v430
    %v432 = vpop.f32.mrf.mxu0
    %433 = vmatprep.mubr.f32.mxu0 0.0
    %434 = vmatmul.mubr.f32.gmra.mxu0 %v294
    %v435 = vpop.f32.mrf.mxu0
    %v436 = vadd.f32 %v322, %v435
    %v437 = vpop.f32.mrf.mxu0
    %438 = vmatprep.mubr.f32.mxu0 0.0
    %439 = vmatmul.mubr.f32.gmra.mxu0 %v295
    %v440 = vpop.f32.mrf.mxu0
    %v441 = vadd.f32 %v322, %v440
    %v442 = vpop.f32.mrf.mxu0
    %443 = vmatprep.mubr.f32.mxu0 0.0
    %444 = vmatmul.mubr.f32.gmra.mxu0 %v296
    %v445 = vpop.f32.mrf.mxu0
    %v446 = vadd.f32 %v322, %v445
    %v447 = vpop.f32.mrf.mxu0
    %448 = vmatprep.mubr.f32.mxu0 0.0
    %449 = vmatmul.mubr.f32.gmra.mxu0 %v297
    %v450 = vpop.f32.mrf.mxu0
    %v451 = vadd.f32 %v322, %v450
    %v452 = vpop.f32.mrf.mxu0
    %453 = vmatprep.mubr.f32.mxu0 0.0
    %454 = vmatmul.mubr.f32.gmra.mxu0 %v298
    %v455 = vpop.f32.mrf.mxu0
    %v456 = vadd.f32 %v322, %v455
    %v457 = vpop.f32.mrf.mxu0
    %458 = vmatprep.mubr.f32.mxu0 0.0
    %459 = vmatmul.mubr.f32.gmra.mxu0 %v299
    %v460 = vpop.f32.mrf.mxu0
    %v461 = vadd.f32 %v322, %v460
    %v462 = vpop.f32.mrf.mxu0
    %463 = vmatprep.mubr.f32.mxu0 0.0
    %464 = vmatmul.mubr.f32.gmra.mxu0 %v300
    %v465 = vpop.f32.mrf.mxu0
    %v466 = vadd.f32 %v322, %v465
    %v467 = vpop.f32.mrf.mxu0
    %468 = vdwg.mxu0
    %v469 = vmax.f32 %v391, 0.0
    %v470 = vmax.f32 %v396, 0.0
    %v471 = vmax.f32 %v401, 0.0
    %v472 = vmax.f32 %v406, 0.0
    %v473 = vmax.f32 %v411, 0.0
    %v474 = vmax.f32 %v416, 0.0
    %v475 = vmax.f32 %v421, 0.0
    %v476 = vmax.f32 %v426, 0.0
    %v477 = vmax.f32 %v431, 0.0
    %v478 = vmax.f32 %v436, 0.0
    %v479 = vmax.f32 %v441, 0.0
    %v480 = vmax.f32 %v446, 0.0
    %v481 = vmax.f32 %v451, 0.0
    %v482 = vmax.f32 %v456, 0.0
    %v483 = vmax.f32 %v461, 0.0
    %v484 = vmax.f32 %v466, 0.0
    %v485 = vld [vmem:[#allocation8] sm:$0xff]
    %v486 = vld [vmem:[#allocation8 + $0x8] sm:$0xff]
    %v487 = vld [vmem:[#allocation8 + $0x10] sm:$0xff]
    %v488 = vld [vmem:[#allocation8 + $0x18] sm:$0xff]
    %v489 = vld [vmem:[#allocation8 + $0x20] sm:$0xff]
    %v490 = vld [vmem:[#allocation8 + $0x28] sm:$0xff]
    %v491 = vld [vmem:[#allocation8 + $0x30] sm:$0xff]
    %v492 = vld [vmem:[#allocation8 + $0x38] sm:$0xff]
    %v493 = vld [vmem:[#allocation8 + $0x40] sm:$0xff]
    %v494 = vld [vmem:[#allocation8 + $0x48] sm:$0xff]
    %v495 = vld [vmem:[#allocation8 + $0x50] sm:$0xff]
    %v496 = vld [vmem:[#allocation8 + $0x58] sm:$0xff]
    %v497 = vld [vmem:[#allocation8 + $0x60] sm:$0xff]
    %v498 = vld [vmem:[#allocation8 + $0x68] sm:$0xff]
    %v499 = vld [vmem:[#allocation8 + $0x70] sm:$0xff]
    %v500 = vld [vmem:[#allocation8 + $0x78] sm:$0xff]
    %v501 = vld [vmem:[%s6] sm:$0x1]
    %v503 = vlaneseq
    %v504 = vshrl.u32 %v503, 7
    %v505 = vsub.s32 0, %v504
    %v506 = vrot.slane %v501, %v505
    %508 = vmatprep.subr.mxu0 0.0
    %509 = vmatpush1.msra.mxu0 %v500
    %510 = vmatprep.subr.mxu0 0.0
    %511 = vmatpush1.msra.mxu0 %v499
    %512 = vmatprep.subr.mxu0 0.0
    %513 = vmatpush1.msra.mxu0 %v498
    %514 = vmatprep.subr.mxu0 0.0
    %515 = vmatpush1.msra.mxu0 %v497
    %516 = vmatprep.subr.mxu0 0.0
    %517 = vmatpush1.msra.mxu0 %v496
    %518 = vmatprep.subr.mxu0 0.0
    %519 = vmatpush1.msra.mxu0 %v495
    %520 = vmatprep.subr.mxu0 0.0
    %521 = vmatpush1.msra.mxu0 %v494
    %522 = vmatprep.subr.mxu0 0.0
    %523 = vmatpush1.msra.mxu0 %v493
    %524 = vmatprep.subr.mxu0 0.0
    %525 = vmatpush1.msra.mxu0 %v492
    %526 = vmatprep.subr.mxu0 0.0
    %527 = vmatpush1.msra.mxu0 %v491
    %528 = vmatprep.subr.mxu0 0.0
    %529 = vmatpush1.msra.mxu0 %v490
    %530 = vmatprep.subr.mxu0 0.0
    %531 = vmatpush1.msra.mxu0 %v489
    %532 = vmatprep.subr.mxu0 0.0
    %533 = vmatpush1.msra.mxu0 %v488
    %534 = vmatprep.subr.mxu0 0.0
    %535 = vmatpush1.msra.mxu0 %v487
    %536 = vmatprep.subr.mxu0 0.0
    %537 = vmatpush1.msra.mxu0 %v486
    %538 = vmatprep.subr.mxu0 0.0
    %539 = vmatpush1.msra.mxu0 %v485
    %540 = vmatprep.subr.mxu0 0.0
    %541 = vmatpush2.msra.mxu0 0.0
    %542 = vmatprep.subr.mxu0 0.0
    %543 = vmatpush2.msra.mxu0 0.0
    %544 = vmatprep.subr.mxu0 0.0
    %545 = vmatpush2.msra.mxu0 0.0
    %546 = vmatprep.subr.mxu0 0.0
    %547 = vmatpush2.msra.mxu0 0.0
    %548 = vmatprep.subr.mxu0 0.0
    %549 = vmatpush2.msra.mxu0 0.0
    %550 = vmatprep.subr.mxu0 0.0
    %551 = vmatpush2.msra.mxu0 0.0
    %552 = vmatprep.subr.mxu0 0.0
    %553 = vmatpush2.msra.mxu0 0.0
    %554 = vmatprep.subr.mxu0 0.0
    %555 = vmatpush2.msra.mxu0 0.0
    %556 = vmatprep.subr.mxu0 0.0
    %557 = vmatpush2.msra.mxu0 0.0
    %558 = vmatprep.subr.mxu0 0.0
    %559 = vmatpush2.msra.mxu0 0.0
    %560 = vmatprep.subr.mxu0 0.0
    %561 = vmatpush2.msra.mxu0 0.0
    %562 = vmatprep.subr.mxu0 0.0
    %563 = vmatpush2.msra.mxu0 0.0
    %564 = vmatprep.subr.mxu0 0.0
    %565 = vmatpush2.msra.mxu0 0.0
    %566 = vmatprep.subr.mxu0 0.0
    %567 = vmatpush2.msra.mxu0 0.0
    %568 = vmatprep.subr.mxu0 0.0
    %569 = vmatpush2.msra.mxu0 0.0
    %570 = vmatprep.subr.mxu0 0.0
    %571 = vmatpush2.msra.mxu0 0.0
    %572 = vmatprep.mubr.f32.mxu0 0.0
    %573 = vmatmul.mubr.f32.gmra.mxu0 %v469
    %v574 = vpop.f32.mrf.mxu0
    %v575 = vadd.f32 %v506, %v574
    %v576 = vpop.f32.mrf.mxu0
    %577 = vmatprep.mubr.f32.mxu0 0.0
    %578 = vmatmul.mubr.f32.gmra.mxu0 %v470
    %v579 = vpop.f32.mrf.mxu0
    %v580 = vadd.f32 %v506, %v579
    %v581 = vpop.f32.mrf.mxu0
    %582 = vmatprep.mubr.f32.mxu0 0.0
    %583 = vmatmul.mubr.f32.gmra.mxu0 %v471
    %v584 = vpop.f32.mrf.mxu0
    %v585 = vadd.f32 %v506, %v584
    %v586 = vpop.f32.mrf.mxu0
    %587 = vmatprep.mubr.f32.mxu0 0.0
    %588 = vmatmul.mubr.f32.gmra.mxu0 %v472
    %v589 = vpop.f32.mrf.mxu0
    %v590 = vadd.f32 %v506, %v589
    %v591 = vpop.f32.mrf.mxu0
    %592 = vmatprep.mubr.f32.mxu0 0.0
    %593 = vmatmul.mubr.f32.gmra.mxu0 %v473
    %v594 = vpop.f32.mrf.mxu0
    %v595 = vadd.f32 %v506, %v594
    %v596 = vpop.f32.mrf.mxu0
    %597 = vmatprep.mubr.f32.mxu0 0.0
    %598 = vmatmul.mubr.f32.gmra.mxu0 %v474
    %v599 = vpop.f32.mrf.mxu0
    %v600 = vadd.f32 %v506, %v599
    %v601 = vpop.f32.mrf.mxu0
    %602 = vmatprep.mubr.f32.mxu0 0.0
    %603 = vmatmul.mubr.f32.gmra.mxu0 %v475
    %v604 = vpop.f32.mrf.mxu0
    %v605 = vadd.f32 %v506, %v604
    %v606 = vpop.f32.mrf.mxu0
    %607 = vmatprep.mubr.f32.mxu0 0.0
    %608 = vmatmul.mubr.f32.gmra.mxu0 %v476
    %v609 = vpop.f32.mrf.mxu0
    %v610 = vadd.f32 %v506, %v609
    %v611 = vpop.f32.mrf.mxu0
    %612 = vmatprep.mubr.f32.mxu0 0.0
    %613 = vmatmul.mubr.f32.gmra.mxu0 %v477
    %v614 = vpop.f32.mrf.mxu0
    %v615 = vadd.f32 %v506, %v614
    %v616 = vpop.f32.mrf.mxu0
    %617 = vmatprep.mubr.f32.mxu0 0.0
    %618 = vmatmul.mubr.f32.gmra.mxu0 %v478
    %v619 = vpop.f32.mrf.mxu0
    %v620 = vadd.f32 %v506, %v619
    %v621 = vpop.f32.mrf.mxu0
    %622 = vmatprep.mubr.f32.mxu0 0.0
    %623 = vmatmul.mubr.f32.gmra.mxu0 %v479
    %v624 = vpop.f32.mrf.mxu0
    %v625 = vadd.f32 %v506, %v624
    %v626 = vpop.f32.mrf.mxu0
    %627 = vmatprep.mubr.f32.mxu0 0.0
    %628 = vmatmul.mubr.f32.gmra.mxu0 %v480
    %v629 = vpop.f32.mrf.mxu0
    %v630 = vadd.f32 %v506, %v629
    %v631 = vpop.f32.mrf.mxu0
    %632 = vmatprep.mubr.f32.mxu0 0.0
    %633 = vmatmul.mubr.f32.gmra.mxu0 %v481
    %v634 = vpop.f32.mrf.mxu0
    %v635 = vadd.f32 %v506, %v634
    %v636 = vpop.f32.mrf.mxu0
    %637 = vmatprep.mubr.f32.mxu0 0.0
    %638 = vmatmul.mubr.f32.gmra.mxu0 %v482
    %v639 = vpop.f32.mrf.mxu0
    %v640 = vadd.f32 %v506, %v639
    %v641 = vpop.f32.mrf.mxu0
    %642 = vmatprep.mubr.f32.mxu0 0.0
    %643 = vmatmul.mubr.f32.gmra.mxu0 %v483
    %v644 = vpop.f32.mrf.mxu0
    %v645 = vadd.f32 %v506, %v644
    %v646 = vpop.f32.mrf.mxu0
    %647 = vmatprep.mubr.f32.mxu0 0.0
    %648 = vmatmul.mubr.f32.gmra.mxu0 %v484
    %v649 = vpop.f32.mrf.mxu0
    %v650 = vadd.f32 %v506, %v649
    %v651 = vpop.f32.mrf.mxu0
    %652 = vdwg.mxu0
    %v653 = vmax.f32 %v575, 0.0
    %v654 = vmax.f32 %v580, 0.0
    %v655 = vmax.f32 %v585, 0.0
    %v656 = vmax.f32 %v590, 0.0
    %v657 = vmax.f32 %v595, 0.0
    %v658 = vmax.f32 %v600, 0.0
    %v659 = vmax.f32 %v605, 0.0
    %v660 = vmax.f32 %v610, 0.0
    %v661 = vmax.f32 %v615, 0.0
    %v662 = vmax.f32 %v620, 0.0
    %v663 = vmax.f32 %v625, 0.0
    %v664 = vmax.f32 %v630, 0.0
    %v665 = vmax.f32 %v635, 0.0
    %v666 = vmax.f32 %v640, 0.0
    %v667 = vmax.f32 %v645, 0.0
    %v668 = vmax.f32 %v650, 0.0
    %v669 = vld [vmem:[#allocation10] sm:$0xff]
    %v670 = vld [vmem:[#allocation10 + $0x8] sm:$0xff]
    %v671 = vld [vmem:[#allocation10 + $0x10] sm:$0xff]
    %v672 = vld [vmem:[#allocation10 + $0x18] sm:$0xff]
    %v673 = vld [vmem:[#allocation10 + $0x20] sm:$0xff]
    %v674 = vld [vmem:[#allocation10 + $0x28] sm:$0xff]
    %v675 = vld [vmem:[#allocation10 + $0x30] sm:$0xff]
    %v676 = vld [vmem:[#allocation10 + $0x38] sm:$0xff]
    %v677 = vld [vmem:[#allocation10 + $0x40] sm:$0xff]
    %v678 = vld [vmem:[#allocation10 + $0x48] sm:$0xff]
    %v679 = vld [vmem:[#allocation10 + $0x50] sm:$0xff]
    %v680 = vld [vmem:[#allocation10 + $0x58] sm:$0xff]
    %v681 = vld [vmem:[#allocation10 + $0x60] sm:$0xff]
    %v682 = vld [vmem:[#allocation10 + $0x68] sm:$0xff]
    %v683 = vld [vmem:[#allocation10 + $0x70] sm:$0xff]
    %v684 = vld [vmem:[#allocation10 + $0x78] sm:$0xff]
    %v685 = vld [vmem:[%s8] sm:$0x1]
    %v687 = vlaneseq
    %v688 = vshrl.u32 %v687, 7
    %v689 = vsub.s32 0, %v688
    %v690 = vrot.slane %v685, %v689
    %692 = vmatprep.subr.mxu0 0.0
    %693 = vmatpush1.msra.mxu0 %v684
    %694 = vmatprep.subr.mxu0 0.0
    %695 = vmatpush1.msra.mxu0 %v683
    %696 = vmatprep.subr.mxu0 0.0
    %697 = vmatpush1.msra.mxu0 %v682
    %698 = vmatprep.subr.mxu0 0.0
    %699 = vmatpush1.msra.mxu0 %v681
    %700 = vmatprep.subr.mxu0 0.0
    %701 = vmatpush1.msra.mxu0 %v680
    %702 = vmatprep.subr.mxu0 0.0
    %703 = vmatpush1.msra.mxu0 %v679
    %704 = vmatprep.subr.mxu0 0.0
    %705 = vmatpush1.msra.mxu0 %v678
    %706 = vmatprep.subr.mxu0 0.0
    %707 = vmatpush1.msra.mxu0 %v677
    %708 = vmatprep.subr.mxu0 0.0
    %709 = vmatpush1.msra.mxu0 %v676
    %710 = vmatprep.subr.mxu0 0.0
    %711 = vmatpush1.msra.mxu0 %v675
    %712 = vmatprep.subr.mxu0 0.0
    %713 = vmatpush1.msra.mxu0 %v674
    %714 = vmatprep.subr.mxu0 0.0
    %715 = vmatpush1.msra.mxu0 %v673
    %716 = vmatprep.subr.mxu0 0.0
    %717 = vmatpush1.msra.mxu0 %v672
    %718 = vmatprep.subr.mxu0 0.0
    %719 = vmatpush1.msra.mxu0 %v671
    %720 = vmatprep.subr.mxu0 0.0
    %721 = vmatpush1.msra.mxu0 %v670
    %722 = vmatprep.subr.mxu0 0.0
    %723 = vmatpush1.msra.mxu0 %v669
    %724 = vmatprep.subr.mxu0 0.0
    %725 = vmatpush2.msra.mxu0 0.0
    %726 = vmatprep.subr.mxu0 0.0
    %727 = vmatpush2.msra.mxu0 0.0
    %728 = vmatprep.subr.mxu0 0.0
    %729 = vmatpush2.msra.mxu0 0.0
    %730 = vmatprep.subr.mxu0 0.0
    %731 = vmatpush2.msra.mxu0 0.0
    %732 = vmatprep.subr.mxu0 0.0
    %733 = vmatpush2.msra.mxu0 0.0
    %734 = vmatprep.subr.mxu0 0.0
    %735 = vmatpush2.msra.mxu0 0.0
    %736 = vmatprep.subr.mxu0 0.0
    %737 = vmatpush2.msra.mxu0 0.0
    %738 = vmatprep.subr.mxu0 0.0
    %739 = vmatpush2.msra.mxu0 0.0
    %740 = vmatprep.subr.mxu0 0.0
    %741 = vmatpush2.msra.mxu0 0.0
    %742 = vmatprep.subr.mxu0 0.0
    %743 = vmatpush2.msra.mxu0 0.0
    %744 = vmatprep.subr.mxu0 0.0
    %745 = vmatpush2.msra.mxu0 0.0
    %746 = vmatprep.subr.mxu0 0.0
    %747 = vmatpush2.msra.mxu0 0.0
    %748 = vmatprep.subr.mxu0 0.0
    %749 = vmatpush2.msra.mxu0 0.0
    %750 = vmatprep.subr.mxu0 0.0
    %751 = vmatpush2.msra.mxu0 0.0
    %752 = vmatprep.subr.mxu0 0.0
    %753 = vmatpush2.msra.mxu0 0.0
    %754 = vmatprep.subr.mxu0 0.0
    %755 = vmatpush2.msra.mxu0 0.0
    %756 = vmatprep.mubr.f32.mxu0 0.0
    %757 = vmatmul.mubr.f32.gmra.mxu0 %v653
    %v758 = vpop.f32.mrf.mxu0
    %v759 = vadd.f32 %v690, %v758
    %v760 = vpop.f32.mrf.mxu0
    %761 = vmatprep.mubr.f32.mxu0 0.0
    %762 = vmatmul.mubr.f32.gmra.mxu0 %v654
    %v763 = vpop.f32.mrf.mxu0
    %v764 = vadd.f32 %v690, %v763
    %v765 = vpop.f32.mrf.mxu0
    %766 = vmatprep.mubr.f32.mxu0 0.0
    %767 = vmatmul.mubr.f32.gmra.mxu0 %v655
    %v768 = vpop.f32.mrf.mxu0
    %v769 = vadd.f32 %v690, %v768
    %v770 = vpop.f32.mrf.mxu0
    %771 = vmatprep.mubr.f32.mxu0 0.0
    %772 = vmatmul.mubr.f32.gmra.mxu0 %v656
    %v773 = vpop.f32.mrf.mxu0
    %v774 = vadd.f32 %v690, %v773
    %v775 = vpop.f32.mrf.mxu0
    %776 = vmatprep.mubr.f32.mxu0 0.0
    %777 = vmatmul.mubr.f32.gmra.mxu0 %v657
    %v778 = vpop.f32.mrf.mxu0
    %v779 = vadd.f32 %v690, %v778
    %v780 = vpop.f32.mrf.mxu0
    %781 = vmatprep.mubr.f32.mxu0 0.0
    %782 = vmatmul.mubr.f32.gmra.mxu0 %v658
    %v783 = vpop.f32.mrf.mxu0
    %v784 = vadd.f32 %v690, %v783
    %v785 = vpop.f32.mrf.mxu0
    %786 = vmatprep.mubr.f32.mxu0 0.0
    %787 = vmatmul.mubr.f32.gmra.mxu0 %v659
    %v788 = vpop.f32.mrf.mxu0
    %v789 = vadd.f32 %v690, %v788
    %v790 = vpop.f32.mrf.mxu0
    %791 = vmatprep.mubr.f32.mxu0 0.0
    %792 = vmatmul.mubr.f32.gmra.mxu0 %v660
    %v793 = vpop.f32.mrf.mxu0
    %v794 = vadd.f32 %v690, %v793
    %v795 = vpop.f32.mrf.mxu0
    %796 = vmatprep.mubr.f32.mxu0 0.0
    %797 = vmatmul.mubr.f32.gmra.mxu0 %v661
    %v798 = vpop.f32.mrf.mxu0
    %v799 = vadd.f32 %v690, %v798
    %v800 = vpop.f32.mrf.mxu0
    %801 = vmatprep.mubr.f32.mxu0 0.0
    %802 = vmatmul.mubr.f32.gmra.mxu0 %v662
    %v803 = vpop.f32.mrf.mxu0
    %v804 = vadd.f32 %v690, %v803
    %v805 = vpop.f32.mrf.mxu0
    %806 = vmatprep.mubr.f32.mxu0 0.0
    %807 = vmatmul.mubr.f32.gmra.mxu0 %v663
    %v808 = vpop.f32.mrf.mxu0
    %v809 = vadd.f32 %v690, %v808
    %v810 = vpop.f32.mrf.mxu0
    %811 = vmatprep.mubr.f32.mxu0 0.0
    %812 = vmatmul.mubr.f32.gmra.mxu0 %v664
    %v813 = vpop.f32.mrf.mxu0
    %v814 = vadd.f32 %v690, %v813
    %v815 = vpop.f32.mrf.mxu0
    %816 = vmatprep.mubr.f32.mxu0 0.0
    %817 = vmatmul.mubr.f32.gmra.mxu0 %v665
    %v818 = vpop.f32.mrf.mxu0
    %v819 = vadd.f32 %v690, %v818
    %v820 = vpop.f32.mrf.mxu0
    %821 = vmatprep.mubr.f32.mxu0 0.0
    %822 = vmatmul.mubr.f32.gmra.mxu0 %v666
    %v823 = vpop.f32.mrf.mxu0
    %v824 = vadd.f32 %v690, %v823
    %v825 = vpop.f32.mrf.mxu0
    %826 = vmatprep.mubr.f32.mxu0 0.0
    %827 = vmatmul.mubr.f32.gmra.mxu0 %v667
    %v828 = vpop.f32.mrf.mxu0
    %v829 = vadd.f32 %v690, %v828
    %v830 = vpop.f32.mrf.mxu0
    %831 = vmatprep.mubr.f32.mxu0 0.0
    %832 = vmatmul.mubr.f32.gmra.mxu0 %v668
    %v833 = vpop.f32.mrf.mxu0
    %v834 = vadd.f32 %v690, %v833
    %v835 = vpop.f32.mrf.mxu0
    %836 = vdwg.mxu0
    %837 = vst [vmem:[#allocation11] sm:$0xff] %v759
    %838 = vst [vmem:[#allocation11 + $0x8] sm:$0xff] %v764
    %839 = vst [vmem:[#allocation11 + $0x10] sm:$0xff] %v769
    %840 = vst [vmem:[#allocation11 + $0x18] sm:$0xff] %v774
    %841 = vst [vmem:[#allocation11 + $0x20] sm:$0xff] %v779
    %842 = vst [vmem:[#allocation11 + $0x28] sm:$0xff] %v784
    %843 = vst [vmem:[#allocation11 + $0x30] sm:$0xff] %v789
    %844 = vst [vmem:[#allocation11 + $0x38] sm:$0xff] %v794
    %845 = vst [vmem:[#allocation11 + $0x40] sm:$0xff] %v799
    %846 = vst [vmem:[#allocation11 + $0x48] sm:$0xff] %v804
    %847 = vst [vmem:[#allocation11 + $0x50] sm:$0xff] %v809
    %848 = vst [vmem:[#allocation11 + $0x58] sm:$0xff] %v814
    %849 = vst [vmem:[#allocation11 + $0x60] sm:$0xff] %v819
    %850 = vst [vmem:[#allocation11 + $0x68] sm:$0xff] %v824
    %851 = vst [vmem:[#allocation11 + $0x70] sm:$0xff] %v829
    %852 = vst [vmem:[#allocation11 + $0x78] sm:$0xff] %v834
    // Predicated region
    $region58: #{tpu_custom_call.1} parent=1 // pred_check
      _
    $region59: #{tpu_custom_call.1} parent=1 // pred_check_branch
      %854 = sbr.rel (0) target = $region61
    $region60: #{tpu_custom_call.1} parent=1 // pred_region
      %s856 = ssub.s32 2048, 2048
      %857 = vsyncadd [#allocation4], %s856
      %s858 = sshll.u32 [#allocation11], 4
      %s859 = int_to_ptr.vmem [resolvable:$true] %s858
      %864 = dma.vmem_to_hbm [thread:$0]  %s859, 2048, %s9, [#allocation4], 128, 128, 8
    $region61: #{tpu_custom_call.1} parent=1 // pred_fallthru
      _
    // Predicated region
    $region62: #{tpu_custom_call.1} parent=1 // pred_check
      _
    $region63: #{tpu_custom_call.1} parent=1 // pred_check_branch
      %866 = sbr.rel (0) target = $region65
    $region64: #{tpu_custom_call.1} parent=1 // pred_region
      %867 = dma.done [#allocation4], 2048
    $region65: #{tpu_custom_call.1} parent=1 // pred_fallthru
      _
    %868 = vsyncpa [#allocation3], 1
    %869 = vsyncpa [#allocation6], 1
    %870 = vsyncpa [#allocation9], 1
    %871 = vsyncpa [#allocation4], 1

</llo_original>
